<compile_context>
chip_gen: v7x
topology: tpu7x:2x2x1
jax: 0.10.0
libtpu: 0.0.40
codegen_flags: <defaults>
</compile_context>

<pallas_src>
import math
from functools import partial

import numpy as np
import jax
import jax.numpy as jnp
from jax.experimental import pallas as pl
from jax.experimental.pallas import tpu as pltpu

_VMEM_LIMIT = 48 * 1024 * 1024  # <= 64 MiB physical VMEM on v7x


# ----------------------------------------------------------------------------
# Tiling helpers
# ----------------------------------------------------------------------------
def _round_up(x, m):
    return (x + m - 1) // m * m


def _choose_tile_m(dim, align=16, max_tile=512):
    """Row-tile: (tile, padded_dim); prefers >=2 grid steps for megacore."""
    padded = _round_up(dim, align)
    if padded > max_tile:
        return max_tile, _round_up(dim, max_tile)
    tile = padded
    if tile >= 2 * align and tile % (2 * align) == 0:
        tile //= 2          # keep >=2 parallel grid steps (v7x has 2 TCs)
    return tile, padded


def _choose_tile_k(K, max_tile=1024):
    """Largest multiple of 128 dividing round_up(K,128), capped at max_tile."""
    Kp = _round_up(K, 128)
    tk = 128
    t = 256
    while t <= min(Kp, max_tile):
        if Kp % t == 0:
            tk = t
        t += 128
    return tk, Kp


# ----------------------------------------------------------------------------
# Tiled GEMM (+bias, +ReLU/PReLU) Pallas kernels
# ----------------------------------------------------------------------------
def _mm_kernel_single(activation, out_dtype):
    def kernel(x_ref, w_ref, b_ref, *rest):
        if activation == "prelu":
            a_ref, o_ref = rest
        else:
            (o_ref,) = rest
        y = jnp.dot(x_ref[...], w_ref[...],
                    preferred_element_type=jnp.float32) + b_ref[...]
        if activation == "relu":
            y = jnp.maximum(y, 0.0)
        elif activation == "prelu":
            y = jnp.where(y >= 0.0, y, y * a_ref[...])
        o_ref[...] = y.astype(out_dtype)
    return kernel


def _mm_kernel_multi(activation, out_dtype):
    def kernel(x_ref, w_ref, b_ref, *rest):
        if activation == "prelu":
            a_ref, o_ref, acc_ref = rest
        else:
            o_ref, acc_ref = rest
        k = pl.program_id(1)

        @pl.when(k == 0)
        def _():
            acc_ref[...] = jnp.zeros_like(acc_ref)

        acc_ref[...] += jnp.dot(x_ref[...], w_ref[...],
                                preferred_element_type=jnp.float32)

        @pl.when(k == pl.num_programs(1) - 1)
        def _():
            y = acc_ref[...] + b_ref[...]
            if activation == "relu":
                y = jnp.maximum(y, 0.0)
            elif activation == "prelu":
                y = jnp.where(y >= 0.0, y, y * a_ref[...])
            o_ref[...] = y.astype(out_dtype)
    return kernel


@partial(jax.jit, static_argnames=("activation", "out_dtype"))
def pallas_matmul(x, w, b, alpha=None, activation="none", out_dtype=jnp.bfloat16):
    """y = act(x @ w + b); x:[M,K], w:[K,N] (N<=512, never padded), b:[N]."""
    M, K = x.shape
    N = w.shape[1]
    tm, Mp = _choose_tile_m(M)
    tk, Kp = _choose_tile_k(K)
    nk = Kp // tk

    xb = jnp.pad(x.astype(jnp.bfloat16), ((0, Mp - M), (0, Kp - K)))
    wb = jnp.pad(w.astype(jnp.bfloat16), ((0, Kp - K), (0, 0)))
    bb = b.reshape(1, N).astype(jnp.float32)
    args = [xb, wb, bb]

    if nk == 1:
        in_specs = [pl.BlockSpec((tm, Kp), lambda i: (i, 0)),
                    pl.BlockSpec((Kp, N), lambda i: (0, 0)),
                    pl.BlockSpec((1, N), lambda i: (0, 0))]
        if activation == "prelu":
            args.append(alpha.reshape(1, N).astype(jnp.float32))
            in_specs.append(pl.BlockSpec((1, N), lambda i: (0, 0)))
        out = pl.pallas_call(
            _mm_kernel_single(activation, out_dtype),
            grid=(Mp // tm,),
            in_specs=in_specs,
            out_specs=pl.BlockSpec((tm, N), lambda i: (i, 0)),
            out_shape=jax.ShapeDtypeStruct((Mp, N), out_dtype),
            compiler_params=pltpu.CompilerParams(
                dimension_semantics=("parallel",),
                vmem_limit_bytes=_VMEM_LIMIT),
        )(*args)
    else:
        in_specs = [pl.BlockSpec((tm, tk), lambda i, k: (i, k)),
                    pl.BlockSpec((tk, N), lambda i, k: (k, 0)),
                    pl.BlockSpec((1, N), lambda i, k: (0, 0))]
        if activation == "prelu":
            args.append(alpha.reshape(1, N).astype(jnp.float32))
            in_specs.append(pl.BlockSpec((1, N), lambda i, k: (0, 0)))
        out = pl.pallas_call(
            _mm_kernel_multi(activation, out_dtype),
            grid=(Mp // tm, nk),
            in_specs=in_specs,
            out_specs=pl.BlockSpec((tm, N), lambda i, k: (i, 0)),
            out_shape=jax.ShapeDtypeStruct((Mp, N), out_dtype),
            scratch_shapes=[pltpu.VMEM((tm, N), jnp.float32)],
            compiler_params=pltpu.CompilerParams(
                dimension_semantics=("parallel", "arbitrary"),
                vmem_limit_bytes=_VMEM_LIMIT),
        )(*args)
    return out if Mp == M else out[:M]


# ----------------------------------------------------------------------------
# Batched correlation matmul: out[b] = scale * x[b] @ y[b]^T (single-K, no scratch)
# ----------------------------------------------------------------------------
def _bmm_kernel(scale):
    def kernel(x_ref, y_ref, o_ref):
        o_ref[0] = jax.lax.dot_general(
            x_ref[0], y_ref[0], (((1,), (1,)), ((), ())),
            preferred_element_type=jnp.float32) * scale
    return kernel


@partial(jax.jit, static_argnames=("scale",))
def pallas_bmm_nt(x, y, scale):
    """x:[B,M,K], y:[B,N,K] -> [B,M,N] f32 = scale * x @ y^T."""
    B, M, K = x.shape
    N = y.shape[1]
    Kp = _round_up(K, 128)
    assert Kp <= 1024, "correlation channel dim expected to fit one MXU tile"
    tm, Mp = _choose_tile_m(M, align=16, max_tile=256)
    tn, Np = _choose_tile_m(N, align=128, max_tile=256)
    xb = jnp.pad(x.astype(jnp.bfloat16), ((0, 0), (0, Mp - M), (0, Kp - K)))
    yb = jnp.pad(y.astype(jnp.bfloat16), ((0, 0), (0, Np - N), (0, Kp - K)))
    out = pl.pallas_call(
        _bmm_kernel(scale),
        grid=(B, Mp // tm, Np // tn),
        in_specs=[pl.BlockSpec((1, tm, Kp), lambda b, i, j: (b, i, 0)),
                  pl.BlockSpec((1, tn, Kp), lambda b, i, j: (b, j, 0))],
        out_specs=pl.BlockSpec((1, tm, tn), lambda b, i, j: (b, i, j)),
        out_shape=jax.ShapeDtypeStruct((B, Mp, Np), jnp.float32),
        compiler_params=pltpu.CompilerParams(
            dimension_semantics=("parallel", "parallel", "parallel"),
            vmem_limit_bytes=_VMEM_LIMIT),
    )(xb, yb)
    return out[:, :M, :N]


# ----------------------------------------------------------------------------
# Fused dual window cross-attention (source & target share the Q projection)
# ----------------------------------------------------------------------------
def _make_dual_wattn_kernel(num_heads, head_dim, C, N, Wb, nWe, scale):
    R = Wb * N

    def kernel(x_ref, fs_ref, ft_ref, wq_ref, bq_ref, wkv_ref, bkv_ref,
               wp_ref, bp_ref, comb_ref, os_ref, ot_ref):
        x = x_ref[...].reshape(R, C)
        q = jnp.dot(x, wq_ref[...], preferred_element_type=jnp.float32) + bq_ref[...]
        q = (q * scale).astype(jnp.bfloat16)
        comb = comb_ref[...]                       # [nWe, heads, N, N] bias(+mask)

        def attend(f_ref, o_ref):
            f = f_ref[...].reshape(R, C)
            kv = jnp.dot(f, wkv_ref[...], preferred_element_type=jnp.float32) + bkv_ref[...]
            kv = kv.astype(jnp.bfloat16)           # [R, 2C]  (k | v)
            o_acc = jnp.zeros((R, C), jnp.float32)
            # TODO(synk): heads kept as an unrolled loop (Mosaic-safe); a single
            # [Wb*heads]-batched dot_general needs a lane-splitting reshape that
            # is not guaranteed to lower.
            for h in range(num_heads):
                lo = h * head_dim
                qh = q[:, lo:lo + head_dim].reshape(Wb, N, head_dim)
                kh = kv[:, lo:lo + head_dim].reshape(Wb, N, head_dim)
                vh = kv[:, C + lo:C + lo + head_dim].reshape(Wb, N, head_dim)
                s = jax.lax.dot_general(qh, kh, (((2,), (2,)), ((0,), (0,))),
                                        preferred_element_type=jnp.float32)   # [Wb,N,N]
                s = (s.reshape(Wb // nWe, nWe, N, N) + comb[:, h][None]).reshape(Wb, N, N)
                s = s - jnp.max(s, axis=-1, keepdims=True)
                p = jnp.exp(s)
                p = p * pl.reciprocal(jnp.sum(p, axis=-1, keepdims=True), approx=True)
                av = jax.lax.dot_general(p.astype(jnp.bfloat16), vh,
                                         (((2,), (1,)), ((0,), (0,))),
                                         preferred_element_type=jnp.float32)  # [Wb,N,D]
                # output projection accumulated per head (avoids lane concat)
                o_acc = o_acc + jnp.dot(av.reshape(R, head_dim).astype(jnp.bfloat16),
                                        wp_ref[h], preferred_element_type=jnp.float32)
            o = o_acc + bp_ref[...]
            o_ref[...] = o.reshape(Wb, N, C).astype(o_ref.dtype)

        attend(fs_ref, os_ref)
        attend(ft_ref, ot_ref)
    return kernel


def _choose_window_block(B_, N, unit, row_cap=4096):
    """Windows per grid step: multiple of `unit`, divides B_, lane/sublane legal."""
    groups = B_ // unit
    feasible = []
    for g in range(1, groups + 1):
        if groups % g:
            continue
        Wb = unit * g
        if Wb * N > row_cap:
            continue
        if Wb % 8 and Wb != B_:
            continue
        feasible.append(Wb)
    if not feasible:
        return B_
    multi = [w for w in feasible if B_ // w >= 2]
    return max(multi) if multi else max(feasible)


@partial(jax.jit, static_argnames=("num_heads",))
def pallas_dual_window_attention(x_w, fs_w, ft_w, comb_bias,
                                 wq, bq, wkv, bkv, wp, bp, num_heads):
    """Cross WindowAttention of x against (source, target) features, shared Q."""
    B_, N, C = x_w.shape
    D = C // num_heads
    scale = D ** (-0.5)
    nWe = comb_bias.shape[0]
    Wb = _choose_window_block(B_, N, nWe)
    kernel = _make_dual_wattn_kernel(num_heads, D, C, N, Wb, nWe, scale)

    args = [x_w.astype(jnp.bfloat16), fs_w.astype(jnp.bfloat16), ft_w.astype(jnp.bfloat16),
            wq.astype(jnp.bfloat16), bq.reshape(1, C).astype(jnp.float32),
            wkv.astype(jnp.bfloat16), bkv.reshape(1, 2 * C).astype(jnp.float32),
            wp.reshape(num_heads, D, C).astype(jnp.bfloat16),
            bp.reshape(1, C).astype(jnp.float32),
            comb_bias.astype(jnp.float32)]
    in_specs = [
        pl.BlockSpec((Wb, N, C), lambda i: (i, 0, 0)),
        pl.BlockSpec((Wb, N, C), lambda i: (i, 0, 0)),
        pl.BlockSpec((Wb, N, C), lambda i: (i, 0, 0)),
        pl.BlockSpec((C, C), lambda i: (0, 0)),
        pl.BlockSpec((1, C), lambda i: (0, 0)),
        pl.BlockSpec((C, 2 * C), lambda i: (0, 0)),
        pl.BlockSpec((1, 2 * C), lambda i: (0, 0)),
        pl.BlockSpec((num_heads, D, C), lambda i: (0, 0, 0)),
        pl.BlockSpec((1, C), lambda i: (0, 0)),
        pl.BlockSpec((nWe, num_heads, N, N), lambda i: (0, 0, 0, 0)),
    ]
    out_specs = [pl.BlockSpec((Wb, N, C), lambda i: (i, 0, 0)),
                 pl.BlockSpec((Wb, N, C), lambda i: (i, 0, 0))]
    out_shape = (jax.ShapeDtypeStruct((B_, N, C), jnp.bfloat16),
                 jax.ShapeDtypeStruct((B_, N, C), jnp.bfloat16))
    return pl.pallas_call(
        kernel, grid=(B_ // Wb,),
        in_specs=in_specs, out_specs=out_specs, out_shape=out_shape,
        compiler_params=pltpu.CompilerParams(
            dimension_semantics=("parallel",),
            vmem_limit_bytes=_VMEM_LIMIT),
    )(*args)


# ----------------------------------------------------------------------------
# Fused SwinIR block tail (merge + LN + residual + MLP(GELU) + LN + residual)
# ----------------------------------------------------------------------------
def _make_tail_kernel(eps=1e-5):
    def layernorm(x, g, b):
        mu = jnp.mean(x, axis=-1, keepdims=True)
        var = jnp.mean((x - mu) ** 2, axis=-1, keepdims=True)
        return (x - mu) * jax.lax.rsqrt(var + eps) * g + b

    def gelu(x):
        # TODO(synk): nn.GELU default is exact erf; tanh approximation used for
        # Mosaic-safe elementwise lowering.
        c = math.sqrt(2.0 / math.pi)
        return 0.5 * x * (1.0 + jnp.tanh(c * (x + 0.044715 * x * x * x)))

    def kernel(attn_ref, short_ref, wm_ref, g1_ref, b1_ref, w1_ref, bb1_ref,
               w2_ref, bb2_ref, g2_ref, b2_ref, o_ref):
        x = jnp.dot(attn_ref[...], wm_ref[...], preferred_element_type=jnp.float32)
        x = layernorm(x, g1_ref[...], b1_ref[...])
        x = short_ref[...].astype(jnp.float32) + x
        h = jnp.dot(x.astype(jnp.bfloat16), w1_ref[...],
                    preferred_element_type=jnp.float32) + bb1_ref[...]
        h = gelu(h)
        y = jnp.dot(h.astype(jnp.bfloat16), w2_ref[...],
                    preferred_element_type=jnp.float32) + bb2_ref[...]
        y = layernorm(y, g2_ref[...], b2_ref[...])
        o_ref[...] = (x + y).astype(o_ref.dtype)
    return kernel


@jax.jit
def pallas_block_tail(attn_out, shortcut, wm, g1, b1, w1, bb1, w2, bb2, g2, b2):
    M, C = attn_out.shape
    Hd = w1.shape[1]
    tm, Mp = _choose_tile_m(M)
    attn_p = jnp.pad(attn_out.astype(jnp.bfloat16), ((0, Mp - M), (0, 0)))
    short_p = jnp.pad(shortcut.astype(jnp.bfloat16), ((0, Mp - M), (0, 0)))
    out = pl.pallas_call(
        _make_tail_kernel(),
        grid=(Mp // tm,),
        in_specs=[
            pl.BlockSpec((tm, C), lambda i: (i, 0)),
            pl.BlockSpec((tm, C), lambda i: (i, 0)),
            pl.BlockSpec((C, C), lambda i: (0, 0)),
            pl.BlockSpec((1, C), lambda i: (0, 0)),
            pl.BlockSpec((1, C), lambda i: (0, 0)),
            pl.BlockSpec((C, Hd), lambda i: (0, 0)),
            pl.BlockSpec((1, Hd), lambda i: (0, 0)),
            pl.BlockSpec((Hd, C), lambda i: (0, 0)),
            pl.BlockSpec((1, C), lambda i: (0, 0)),
            pl.BlockSpec((1, C), lambda i: (0, 0)),
            pl.BlockSpec((1, C), lambda i: (0, 0)),
        ],
        out_specs=pl.BlockSpec((tm, C), lambda i: (i, 0)),
        out_shape=jax.ShapeDtypeStruct((Mp, C), jnp.bfloat16),
        compiler_params=pltpu.CompilerParams(
            dimension_semantics=("parallel",),
            vmem_limit_bytes=_VMEM_LIMIT),
    )(attn_p, short_p, wm.astype(jnp.bfloat16), g1.reshape(1, C), b1.reshape(1, C),
      w1.astype(jnp.bfloat16), bb1.reshape(1, Hd), w2.astype(jnp.bfloat16),
      bb2.reshape(1, C), g2.reshape(1, C), b2.reshape(1, C))
    return out if Mp == M else out[:M]


# ----------------------------------------------------------------------------
# Conv / deconv via bf16 im2col + tiled Pallas GEMM
# TODO(synk): a tap-loop-in-kernel conv would remove the im2col HBM round trip
# entirely; bf16 patches halve it and are kept for robustness.
# ----------------------------------------------------------------------------
def im2col(x, kh, kw, stride, pad):
    B, H, W, C = x.shape
    if pad:
        x = jnp.pad(x, ((0, 0), (pad, pad), (pad, pad), (0, 0)))
    Hp, Wp = H + 2 * pad, W + 2 * pad
    Ho = (Hp - kh) // stride + 1
    Wo = (Wp - kw) // stride + 1
    cols = [x[:, i:i + (Ho - 1) * stride + 1:stride,
              j:j + (Wo - 1) * stride + 1:stride, :]
            for i in range(kh) for j in range(kw)]
    patches = jnp.stack(cols, axis=3).reshape(B, Ho, Wo, kh * kw * C)
    return patches, Ho, Wo


def conv2d(x, p, stride, pad, activation="none", out_dtype=jnp.bfloat16):
    w, b = p["w"], p["b"]                                    # w: [O,I,kh,kw]
    O, I, kh, kw = w.shape
    patches, Ho, Wo = im2col(x.astype(jnp.bfloat16), kh, kw, stride, pad)
    wmat = jnp.transpose(w, (2, 3, 1, 0)).reshape(kh * kw * I, O)
    alpha = p.get("alpha") if activation == "prelu" else None
    B = x.shape[0]
    y = pallas_matmul(patches.reshape(B * Ho * Wo, kh * kw * I), wmat, b, alpha,
                      activation=activation, out_dtype=out_dtype)
    return y.reshape(B, Ho, Wo, O)


def _deconv4x4_s2_weight(w):
    """ConvTranspose2d(I,O,4,2,1) weight -> [9*I, 4*O] matrix for a 3x3 conv on
    the 1-padded input producing output channels ordered (o, py, px)."""
    I, O = w.shape[0], w.shape[1]
    taps = {0: ((0, 3), (1, 1)), 1: ((1, 2), (2, 0))}        # phase -> ((tap, ktap),...)
    wm = jnp.zeros((3, 3, I, O, 2, 2), w.dtype)
    for py in (0, 1):
        for (ty, ky) in taps[py]:
            for px in (0, 1):
                for (tx, kx) in taps[px]:
                    wm = wm.at[ty, tx, :, :, py, px].set(w[:, :, ky, kx])
    return wm.reshape(9 * I, 4 * O)


def conv_transpose2d(x, p, stride=2, pad=1):
    """ConvTranspose2d(4,2,1) as sub-pixel phase convs + pixel shuffle."""
    w, b = p["w"], p["b"]                                    # w: [I,O,4,4]
    I, O, kh, kw = w.shape
    assert (stride, pad, kh, kw) == (2, 1, 4, 4)
    B = x.shape[0]
    xp = jnp.pad(x.astype(jnp.bfloat16), ((0, 0), (1, 1), (1, 1), (0, 0)))
    patches, Ho, Wo = im2col(xp, 3, 3, 1, 0)                 # [B,H,W,9*I]
    wmat = _deconv4x4_s2_weight(w)
    b4 = jnp.repeat(b, 4)
    y = pallas_matmul(patches.reshape(B * Ho * Wo, 9 * I), wmat, b4,
                      activation="none", out_dtype=jnp.bfloat16)
    return pixel_shuffle(y.reshape(B, Ho, Wo, 4 * O), 2)


def pixel_shuffle(x, r):
    B, H, W, C = x.shape
    Co = C // (r * r)
    x = x.reshape(B, H, W, Co, r, r)
    x = x.transpose(0, 1, 4, 2, 5, 3)
    return x.reshape(B, H * r, W * r, Co)


# ----------------------------------------------------------------------------
# Swin helpers (glue)
# ----------------------------------------------------------------------------
def get_window_size(x_size, window_size, shift_size=None):
    use_window_size = list(window_size)
    use_shift_size = list(shift_size) if shift_size is not None else None
    for i in range(len(x_size)):
        if x_size[i] <= window_size[i]:
            use_window_size[i] = x_size[i]
            if shift_size is not None:
                use_shift_size[i] = 0
    if shift_size is None:
        return tuple(use_window_size)
    return tuple(use_window_size), tuple(use_shift_size)


def window_partition(x, ws):
    B, H, W, C = x.shape
    x = x.reshape(B, H // ws[0], ws[0], W // ws[1], ws[1], C)
    return x.transpose(0, 1, 3, 2, 4, 5).reshape(-1, ws[0], ws[1], C)


def window_reverse(windows, ws, B, H, W):
    x = windows.reshape(B, H // ws[0], W // ws[1], ws[0], ws[1], -1)
    return x.transpose(0, 1, 3, 2, 4, 5).reshape(B, H, W, -1)


def rel_pos_index(ws):
    coords = np.stack(np.meshgrid(np.arange(ws), np.arange(ws), indexing="ij"))
    coords_flatten = coords.reshape(2, -1)
    rel = coords_flatten[:, :, None] - coords_flatten[:, None, :]
    rel = rel.transpose(1, 2, 0).copy()
    rel[:, :, 0] += ws - 1
    rel[:, :, 1] += ws - 1
    rel[:, :, 0] *= 2 * ws - 1
    return rel.sum(-1).astype(np.int32)                     # [N, N]


def compute_attn_mask(h, w, window_size, shift_size):
    ws, ss = get_window_size((h, w), (window_size, window_size), (shift_size, shift_size))
    Hp = int(np.ceil(h / ws[0])) * ws[0]
    Wp = int(np.ceil(w / ws[1])) * ws[1]
    img_mask = np.zeros((1, Hp, Wp, 1), np.float32)
    h_slices = (slice(0, -ws[0]), slice(-ws[0], -ss[0]), slice(-ss[0], None))
    w_slices = (slice(0, -ws[1]), slice(-ws[1], -ss[1]), slice(-ss[1], None))
    cnt = 0
    for hs in h_slices:
        for wsl in w_slices:
            img_mask[:, hs, wsl, :] = cnt
            cnt += 1
    mw = img_mask.reshape(1, Hp // window_size, window_size, Wp // window_size, window_size, 1)
    mw = mw.transpose(0, 1, 3, 2, 4, 5).reshape(-1, window_size * window_size)
    attn_mask = mw[:, None, :] - mw[:, :, None]
    attn_mask = np.where(attn_mask != 0, -100.0, 0.0).astype(np.float32)
    return jnp.asarray(attn_mask)                            # [nW, N, N]


# ----------------------------------------------------------------------------
# SwinIRBlock (dual source/target) / BasicLayer / Decoders / Encoder
# ----------------------------------------------------------------------------
def swinir_block_dual(x, feat_s, feat_t, attn_mask, p, window_size, shift_size, num_heads):
    b, h, w, c = x.shape
    wsz, ssz = get_window_size((h, w), (window_size, window_size), (shift_size, shift_size))
    shortcut = x
    pad_h = (wsz[0] - h % wsz[0]) % wsz[0]
    pad_w = (wsz[1] - w % wsz[1]) % wsz[1]
    if pad_h or pad_w:
        x = jnp.pad(x, ((0, 0), (0, pad_h), (0, pad_w), (0, 0)))
        feat_s = jnp.pad(feat_s, ((0, 0), (0, pad_h), (0, pad_w), (0, 0)))
        feat_t = jnp.pad(feat_t, ((0, 0), (0, pad_h), (0, pad_w), (0, 0)))
    Hp, Wp = x.shape[1], x.shape[2]
    N = wsz[0] * wsz[1]
    has_mask = any(i > 0 for i in ssz)
    if has_mask:
        x = jnp.roll(x, (-ssz[0], -ssz[1]), axis=(1, 2))
        feat_s = jnp.roll(feat_s, (-ssz[0], -ssz[1]), axis=(1, 2))
        feat_t = jnp.roll(feat_t, (-ssz[0], -ssz[1]), axis=(1, 2))
        comb = p["rel_bias"][None] + attn_mask[:, None]       # [nW, heads, N, N]
    else:
        comb = p["rel_bias"][None]                            # [1, heads, N, N]
    x_w = window_partition(x, wsz).reshape(-1, N, c)
    fs_w = window_partition(feat_s, wsz).reshape(-1, N, c)
    ft_w = window_partition(feat_t, wsz).reshape(-1, N, c)
    attn_s, attn_t = pallas_dual_window_attention(
        x_w, fs_w, ft_w, comb,
        p["wq"]["w"], p["wq"]["b"], p["wkv"]["w"], p["wkv"]["b"],
        p["wp"]["w"], p["wp"]["b"], num_heads=num_heads)

    def finish(aw):
        aw = aw.reshape(-1, wsz[0], wsz[1], c)
        xx = window_reverse(aw, wsz, b, Hp, Wp)
        if has_mask:
            xx = jnp.roll(xx, (ssz[0], ssz[1]), axis=(1, 2))
        if pad_h or pad_w:
            xx = xx[:, :h, :w, :]
        return xx.reshape(-1, c)

    rows = jnp.concatenate([finish(attn_s), finish(attn_t)], axis=0)   # [2*b*h*w, c]
    short_rows = jnp.concatenate([shortcut.reshape(-1, c)] * 2, axis=0)
    out = pallas_block_tail(
        rows, short_rows,
        p["merge_w"], p["norm1_g"], p["norm1_b"],
        p["fc1"]["w"], p["fc1"]["b"], p["fc2"]["w"], p["fc2"]["b"],
        p["norm2_g"], p["norm2_b"])
    out = out.reshape(2, b, h, w, c)
    return out[0], out[1]


def basic_layer(x, source, target, p, depth, num_heads, window_size):
    b, h, w, c = x.shape
    shift = window_size // 2
    attn_mask = compute_attn_mask(h, w, window_size, shift)
    for i in range(depth):
        ss = 0 if i % 2 == 0 else shift
        blk = p["blocks"][i]
        src_att, tgt_att = swinir_block_dual(x, source, target, attn_mask, blk,
                                             window_size, ss, num_heads)
        mixed = jnp.concatenate([src_att, tgt_att], axis=-1)
        x = conv2d(mixed, p["mixer"][i], stride=1, pad=1, activation="prelu")
    return x


def encoder_fwd(x, p):
    # TODO(synk): `convrelu` source not provided; assumed Conv2d + PReLU(out_channels).
    f1 = conv2d(conv2d(x, p["p1"][0], 2, 1, "prelu"), p["p1"][1], 1, 1, "prelu")
    f2 = conv2d(conv2d(f1, p["p2"][0], 2, 1, "prelu"), p["p2"][1], 1, 1, "prelu")
    f3 = conv2d(conv2d(f2, p["p3"][0], 2, 1, "prelu"), p["p3"][1], 1, 1, "prelu")
    return f1, f2, f3


def decoder3_fwd(x, source, target, p):
    x = basic_layer(x, source, target, p["layer"], depth=6, num_heads=6, window_size=4)
    return conv_transpose2d(x, p["upconv"])


def decoder2_fwd(x, source, target, p):
    return basic_layer(x, source, target, p["layer"], depth=6, num_heads=6, window_size=4)


def decoder1_fwd(x, p):
    y = conv2d(x, p, 1, 1, "none", out_dtype=jnp.float32)
    return pixel_shuffle(y, 2)


# ----------------------------------------------------------------------------
# Missing-source pieces (GMFlow matching / warping)
# ----------------------------------------------------------------------------
def global_correlation_softmax_nhwc(f0, f1):
    # TODO(synk): global_correlation_softmax source not provided; GMFlow-style
    # reimplementation (Pallas correlation GEMM; softmax + grid expectation in XLA).
    b, h, w, c = f0.shape
    hw = h * w
    f0f = f0.reshape(b, hw, c)
    f1f = f1.reshape(b, hw, c)
    corr = pallas_bmm_nt(f0f, f1f, scale=float(1.0 / math.sqrt(c)))   # [b,hw,hw]
    yy, xx = jnp.meshgrid(jnp.arange(h, dtype=jnp.float32),
                          jnp.arange(w, dtype=jnp.float32), indexing="ij")
    grid = jnp.stack([xx, yy], axis=-1).reshape(hw, 2)
    prob01 = jax.nn.softmax(corr, axis=-1)
    prob10 = jax.nn.softmax(corr, axis=-2)
    flow01 = (jnp.einsum("bij,jd->bid", prob01, grid) - grid[None]).reshape(b, h, w, 2)
    flow10 = (jnp.einsum("bij,id->bjd", prob10, grid) - grid[None]).reshape(b, h, w, 2)
    dual_prob = prob01
    return flow01, flow10, dual_prob


def fwarp_two_frames(feat0, flow01, t0, feat1, flow10, t1, z0, z1):
    # TODO(synk): fwarp_using_two_frames (forward softmax-splatting warp) source not
    # provided; approximated with a metric-weighted blend without spatial displacement.
    w0 = jnp.exp(z0) * t0
    w1 = jnp.exp(z1) * t1
    denom = w0 + w1
    pred = (w0 * feat0 + w1 * feat1) / (denom + 1e-6)
    return pred, denom < 1e-6


def resize_bilinear(x, factor):
    # TODO(synk): `resize` source not provided; assumed bilinear F.interpolate equivalent.
    b, h, w, c = x.shape
    return jax.image.resize(x, (b, h * factor, w * factor, c), method="bilinear")


# ----------------------------------------------------------------------------
# Parameter init (deterministic, synthetic)
# ----------------------------------------------------------------------------
def init_params(key):
    kit = iter(jax.random.split(key, 512))
    nk = lambda: next(kit)

    def lin(cin, cout):
        return {"w": 0.02 * jax.random.normal(nk(), (cin, cout), jnp.float32),
                "b": jnp.zeros((cout,), jnp.float32)}

    def conv(cin, cout, k):
        return {"w": 0.05 * jax.random.normal(nk(), (cout, cin, k, k), jnp.float32),
                "b": jnp.zeros((cout,), jnp.float32)}

    def convrelu_p(cin, cout, k):
        d = conv(cin, cout, k)
        d["alpha"] = 0.25 * jnp.ones((cout,), jnp.float32)   # PReLU default slope
        return d

    def deconv(cin, cout, k):
        return {"w": 0.05 * jax.random.normal(nk(), (cin, cout, k, k), jnp.float32),
                "b": jnp.zeros((cout,), jnp.float32)}

    def block(dim, num_heads, hidden, ws):
        N = ws * ws
        table = 0.02 * jax.random.normal(nk(), ((2 * ws - 1) * (2 * ws - 1), num_heads),
                                         jnp.float32)
        idx = rel_pos_index(ws).reshape(-1)
        rel_bias = table[idx].reshape(N, N, num_heads).transpose(2, 0, 1)   # [nh,N,N]
        return {"rel_bias": rel_bias,
                "wq": lin(dim, dim), "wkv": lin(dim, 2 * dim), "wp": lin(dim, dim),
                "merge_w": 0.02 * jax.random.normal(nk(), (dim, dim), jnp.float32),
                "norm1_g": jnp.ones((dim,), jnp.float32), "norm1_b": jnp.zeros((dim,), jnp.float32),
                "norm2_g": jnp.ones((dim,), jnp.float32), "norm2_b": jnp.zeros((dim,), jnp.float32),
                "fc1": lin(dim, hidden), "fc2": lin(hidden, dim)}

    def basic(dim, depth, num_heads, ws, mlp_ratio):
        return {"blocks": [block(dim, num_heads, int(dim * mlp_ratio), ws) for _ in range(depth)],
                "mixer": [convrelu_p(dim * 2, dim, 3) for _ in range(depth)]}

    return {
        "alpha": 10.0 * jnp.ones((1, 1, 1, 1), jnp.float32),
        "encoder": {
            "p1": [convrelu_p(3, 48, 3), convrelu_p(48, 48, 3)],
            "p2": [convrelu_p(48, 96, 3), convrelu_p(96, 96, 3)],
            "p3": [convrelu_p(96, 128, 3), convrelu_p(128, 128, 3)],
        },
        "decoder4": deconv(128, 96, 4),
        "decoder3": {"layer": basic(96, 6, 6, 4, 2.0), "upconv": deconv(96, 48, 4)},
        "decoder2": {"layer": basic(48, 6, 6, 4, 4.0)},
        "decoder1": conv(48, 12, 3),
    }


# ----------------------------------------------------------------------------
# GMTransv1 forward (inference path)
# ----------------------------------------------------------------------------
@jax.jit
def gmtrans_forward(params, x0, x1, t):
    B = x0.shape[0]
    t = t.reshape(B, 1, 1, 1)
    x0 = x0 / 255.0
    x1 = x1 / 255.0
    mean_ = jnp.mean(jnp.concatenate([x0, x1], axis=2), axis=(1, 2, 3), keepdims=True)
    x0 = x0 - mean_
    x1 = x1 - mean_
    x0n = jnp.transpose(x0, (0, 2, 3, 1))       # NCHW -> NHWC
    x1n = jnp.transpose(x1, (0, 2, 3, 1))

    f0_1, f0_2, f0_3 = encoder_fwd(x0n, params["encoder"])
    f1_1, f1_2, f1_3 = encoder_fwd(x1n, params["encoder"])
    b, fh, fw, _ = f0_3.shape

    # TODO(synk): feature_add_position + FeatureTransformer (GMFlow) sources not provided; identity.
    af0, af1 = f0_3, f1_3
    f01_4, f10_4, dual_prob = global_correlation_softmax_nhwc(af0, af1)
    # TODO(synk): x1_certainty definition mirrors prior assumption (max over axis=-2 of prob01).
    x0_cert = jnp.max(dual_prob, axis=-1).reshape(b, fh, fw, 1)
    x1_cert = jnp.max(dual_prob, axis=-2).reshape(b, fh, fw, 1)
    alpha = jnp.transpose(params["alpha"], (0, 2, 3, 1))
    z0_4 = (1.0 - x0_cert) * alpha
    z1_4 = (1.0 - x1_cert) * alpha

    pred_feat_t_4, _ = fwarp_two_frames(f0_3, f01_4 * t, t, f1_3, f10_4 * (1 - t), 1 - t,
                                        z0_4, z1_4)
    pred_feat_t_3 = conv_transpose2d(pred_feat_t_4, params["decoder4"])           # 128 -> 96, 2x
    pred_feat_t_2 = decoder3_fwd(pred_feat_t_3, f0_2, f1_2, params["decoder3"])   # 96 -> 48, 2x
    pred_feat_t_1 = decoder2_fwd(pred_feat_t_2, f0_1, f1_1, params["decoder2"])   # 48
    residual = decoder1_fwd(pred_feat_t_1, params["decoder1"])                    # 48 -> 3, 2x

    pred_f01 = resize_bilinear(f01_4, 8) * 8.0
    pred_f10 = resize_bilinear(f10_4, 8) * 8.0
    z0 = resize_bilinear(z0_4, 8)
    z1 = resize_bilinear(z1_4, 8)
    img_t_base, _ = fwarp_two_frames(x0n, pred_f01 * t, t, x1n, pred_f10 * (1 - t), 1 - t, z0, z1)

    mean_n = jnp.transpose(mean_, (0, 2, 3, 1))
    # TODO(synk): denormalize_imgnet_to01 source not provided; treated as identity.
    imgt_pred = jnp.clip(img_t_base + residual + mean_n, 0.0, 1.0)
    return jnp.transpose(imgt_pred, (0, 3, 1, 2))            # back to NCHW


# ----------------------------------------------------------------------------
if __name__ == "__main__":
    key = jax.random.PRNGKey(0)
    pkey, dkey = jax.random.split(key)
    params = init_params(pkey)

    B, H, W = 2, 32, 32
    k0, k1, kt = jax.random.split(dkey, 3)
    x0 = jax.random.uniform(k0, (B, 3, H, W), jnp.float32, 0.0, 255.0)
    x1 = jax.random.uniform(k1, (B, 3, H, W), jnp.float32, 0.0, 255.0)
    t = jax.random.uniform(kt, (B,), jnp.float32, 0.2, 0.8)

    out = gmtrans_forward(params, x0, x1, t)
    out = jax.block_until_ready(out)
    assert out.shape == (B, 3, H, W), out.shape
    assert bool(jnp.all(jnp.isfinite(out)))
    print("KERNEL_OK")
</pallas_src>

<mosaic_0001>
module attributes {stable_mosaic.version = 11 : i64} {
  func.func @kernel(%arg0: i32, %arg1: memref<256x128xbf16, #tpu.memory_space<vmem>>, %arg2: memref<128x48xbf16, #tpu.memory_space<vmem>>, %arg3: memref<1x48xf32, #tpu.memory_space<vmem>>, %arg4: memref<1x48xf32, #tpu.memory_space<vmem>>, %arg5: memref<256x48xbf16, #tpu.memory_space<vmem>>) attributes {dimension_semantics = [#tpu.dimension_semantics<parallel>], iteration_bounds = array<i64: 2>, scalar_prefetch = 0 : i64, scratch_operands = 0 : i64, tpu.core_type = #tpu.core_type<tc>, window_params = [{transform_indices = @transform_0, window_bounds = array<i64: 256, 128>}, {pipeline_mode = #tpu.pipeline_mode<synchronous>, transform_indices = @transform_1, window_bounds = array<i64: 128, 48>}, {pipeline_mode = #tpu.pipeline_mode<synchronous>, transform_indices = @transform_2, window_bounds = array<i64: 1, 48>}, {pipeline_mode = #tpu.pipeline_mode<synchronous>, transform_indices = @transform_3, window_bounds = array<i64: 1, 48>}, {transform_indices = @transform_4, window_bounds = array<i64: 256, 48>}]} {
    %c0 = arith.constant 0 : index
    %c0_0 = arith.constant 0 : index
    %0 = vector.load %arg1[%c0, %c0_0] : memref<256x128xbf16, #tpu.memory_space<vmem>>, vector<256x128xbf16>
    %c0_1 = arith.constant 0 : index
    %c0_2 = arith.constant 0 : index
    %1 = vector.load %arg2[%c0_1, %c0_2] : memref<128x48xbf16, #tpu.memory_space<vmem>>, vector<128x48xbf16>
    %cst = arith.constant dense<0.000000e+00> : vector<256x48xf32>
    %2 = tpu.matmul %0, %1, %cst {dimension_numbers = #tpu.dot_dimension_numbers<[1], [0], [0], [1], [0, 0, 1, 1], [], []>} : vector<256x128xbf16>, vector<128x48xbf16>, vector<256x48xf32> -> vector<256x48xf32>
    %c0_3 = arith.constant 0 : index
    %c0_4 = arith.constant 0 : index
    %3 = vector.load %arg3[%c0_3, %c0_4] : memref<1x48xf32, #tpu.memory_space<vmem>>, vector<1x48xf32>
    %4 = vector.broadcast %3 : vector<1x48xf32> to vector<256x48xf32>
    %5 = arith.addf %2, %4 : vector<256x48xf32>
    %cst_5 = arith.constant 0.000000e+00 : f32
    %6 = vector.broadcast %cst_5 : f32 to vector<256x48xf32>
    %7 = arith.cmpf oge, %5, %6 : vector<256x48xf32>
    %c0_6 = arith.constant 0 : index
    %c0_7 = arith.constant 0 : index
    %8 = vector.load %arg4[%c0_6, %c0_7] : memref<1x48xf32, #tpu.memory_space<vmem>>, vector<1x48xf32>
    %9 = vector.broadcast %8 : vector<1x48xf32> to vector<256x48xf32>
    %10 = arith.mulf %5, %9 : vector<256x48xf32>
    %11 = arith.select %7, %5, %10 : vector<256x48xi1>, vector<256x48xf32>
    %12 = arith.truncf %11 : vector<256x48xf32> to vector<256x48xbf16>
    %c0_8 = arith.constant 0 : index
    %c0_9 = arith.constant 0 : index
    %13 = vector.load %arg5[%c0_8, %c0_9] : memref<256x48xbf16, #tpu.memory_space<vmem>>, vector<256x48xbf16>
    tpu.vector_store %arg5[%c0_8, %c0_9], %12 {strides = array<i32>} : memref<256x48xbf16, #tpu.memory_space<vmem>>, vector<256x48xbf16>,
    return
  }
  func.func @transform_0(%arg0: i32) -> (i32, i32) {
    %c0_i32 = arith.constant 0 : i32
    %c0_i32_0 = arith.constant 0 : i32
    return %arg0, %c0_i32 : i32, i32
  }
  func.func @transform_1(%arg0: i32) -> (i32, i32) {
    %c0_i32 = arith.constant 0 : i32
    %c0_i32_0 = arith.constant 0 : i32
    %c0_i32_1 = arith.constant 0 : i32
    return %c0_i32, %c0_i32_0 : i32, i32
  }
  func.func @transform_2(%arg0: i32) -> (i32, i32) {
    %c0_i32 = arith.constant 0 : i32
    %c0_i32_0 = arith.constant 0 : i32
    %c0_i32_1 = arith.constant 0 : i32
    return %c0_i32, %c0_i32_0 : i32, i32
  }
  func.func @transform_3(%arg0: i32) -> (i32, i32) {
    %c0_i32 = arith.constant 0 : i32
    %c0_i32_0 = arith.constant 0 : i32
    %c0_i32_1 = arith.constant 0 : i32
    return %c0_i32, %c0_i32_0 : i32, i32
  }
  func.func @transform_4(%arg0: i32) -> (i32, i32) {
    %c0_i32 = arith.constant 0 : i32
    %c0_i32_0 = arith.constant 0 : i32
    return %arg0, %c0_i32 : i32, i32
  }
}

</mosaic_0001>

<llo_original>
// kernel: pallas_matmul.1
$region0: #{pallas_matmul.1}
  #allocation0 [shape = 'u32[]', space=smem, size = 0x4, offset = 0x4, fixed_abs, tag = 'smem constant byte address 0x4 - core index']
  #allocation1 [shape = 'u32[144,128]{1,0:T(1,128)}', space=vmem, size = 0x12000, scoped, tag = 'internal scratch']
  %s0 = inlined_call_operand.vmem [shape: bf16[512,128], index: 0, kind: input, shape index: {}]
  %s1 = inlined_call_operand.vmem [shape: bf16[128,48], index: 1, kind: input, shape index: {}]
  %s2 = inlined_call_operand.vmem [shape: f32[1,48], index: 2, kind: input, shape index: {}]
  %s3 = inlined_call_operand.vmem [shape: f32[1,48], index: 3, kind: input, shape index: {}]
  %s4 = inlined_call_operand.vmem [shape: bf16[512,48], index: 4, kind: output, shape index: {}]
  %s5 = sld [smem:[#allocation0]]
  $region49: #{pallas_matmul.1} parent=0
    _
  %s7 = ssub.s32 1, %s5
  %s8 = scalar_select 0, %s7, %s5
  loop: start=0, step=1, limit=4
  $region2: #{pallas_matmul.1} parent=0 // loop_pre_header
    _
  $region3: #{pallas_matmul.1} parent=0 // loop_header
    %s10 = sphi 0, %s14
    %p11 = scmp.ge.s32.totalorder %s10, 4
    %s20 = sphi 0, %s22
    %s23 = sphi 0, %s20
    %s24 = sphi 0, %s23
    %s40 = sphi 0, %s24
    %s44 = sphi 0, %s44
    %s46 = sphi 0, %s44
    %s47 = sphi 0, %s46
    %s61 = sphi 0, %s47
    %s65 = sphi 0, %s65
    %s67 = sphi 0, %s65
    %s68 = sphi 0, %s67
    %s82 = sphi 0, %s68
    %s86 = sphi 0, %s86
    %s88 = sphi 0, %s86
    %s89 = sphi 0, %s88
    %s103 = sphi 0, %s89
    %s109 = sphi 0, %s111
    %s112 = sphi 0, %s109
    %s113 = sphi 0, %s112
    %s129 = sphi 0, %s113
  $region4: #{pallas_matmul.1} parent=0 // loop_header_branch
    %13 = sbr.rel (%p11) target = $region8
  $region5: #{pallas_matmul.1} parent=0 // loop_body
    %s15 = ssub.s32 %s10, 1
    %s16 = ssub.s32 %s10, 2
    %s17 = sadd.s32 %s10, 1
    %s18 = ssub.s32 %s10, %s17
    %p19 = scmp.eq.s32.totalorder %s18, 0
    %s21 = sadd.s32 %s20, 1
    %s22 = scalar_select %p19, %s20, %s21
    %p25 = pneg %p19
    %p26 = scmp.eq.s32.totalorder %s10, 1
    %p27 = por %p25, %p26
    %p28 = scmp.ne.s32.totalorder %s20, %s23
    %p29 = scmp.eq.s32.totalorder %s10, 0
    %p30 = por %p28, %p29
    %p31 = scmp.ne.s32.totalorder %s20, %s23
    %p32 = scmp.eq.s32.totalorder %s15, 1
    %p33 = por %p31, %p32
    %p34 = scmp.ne.s32.totalorder %s23, %s24
    %p35 = scmp.eq.s32.totalorder %s15, 0
    %p36 = por %p34, %p35
    %p37 = scmp.ne.s32.totalorder %s23, %s24
    %p38 = scmp.eq.s32.totalorder %s16, 1
    %p39 = por %p37, %p38
    %p41 = scmp.ne.s32.totalorder %s24, %s40
    %p42 = scmp.eq.s32.totalorder %s16, 0
    %p43 = por %p41, %p42
    %s45 = sadd.s32 %s44, 1
    %p48 = scmp.eq.s32.totalorder %s10, 1
    %p49 = scmp.ne.s32.totalorder %s44, %s46
    %p50 = scmp.eq.s32.totalorder %s10, 0
    %p51 = por %p49, %p50
    %p52 = scmp.ne.s32.totalorder %s44, %s46
    %p53 = scmp.eq.s32.totalorder %s15, 1
    %p54 = por %p52, %p53
    %p55 = scmp.ne.s32.totalorder %s46, %s47
    %p56 = scmp.eq.s32.totalorder %s15, 0
    %p57 = por %p55, %p56
    %p58 = scmp.ne.s32.totalorder %s46, %s47
    %p59 = scmp.eq.s32.totalorder %s16, 1
    %p60 = por %p58, %p59
    %p62 = scmp.ne.s32.totalorder %s47, %s61
    %p63 = scmp.eq.s32.totalorder %s16, 0
    %p64 = por %p62, %p63
    %s66 = sadd.s32 %s65, 1
    %p69 = scmp.eq.s32.totalorder %s10, 1
    %p70 = scmp.ne.s32.totalorder %s65, %s67
    %p71 = scmp.eq.s32.totalorder %s10, 0
    %p72 = por %p70, %p71
    %p73 = scmp.ne.s32.totalorder %s65, %s67
    %p74 = scmp.eq.s32.totalorder %s15, 1
    %p75 = por %p73, %p74
    %p76 = scmp.ne.s32.totalorder %s67, %s68
    %p77 = scmp.eq.s32.totalorder %s15, 0
    %p78 = por %p76, %p77
    %p79 = scmp.ne.s32.totalorder %s67, %s68
    %p80 = scmp.eq.s32.totalorder %s16, 1
    %p81 = por %p79, %p80
    %p83 = scmp.ne.s32.totalorder %s68, %s82
    %p84 = scmp.eq.s32.totalorder %s16, 0
    %p85 = por %p83, %p84
    %s87 = sadd.s32 %s86, 1
    %p90 = scmp.eq.s32.totalorder %s10, 1
    %p91 = scmp.ne.s32.totalorder %s86, %s88
    %p92 = scmp.eq.s32.totalorder %s10, 0
    %p93 = por %p91, %p92
    %p94 = scmp.ne.s32.totalorder %s86, %s88
    %p95 = scmp.eq.s32.totalorder %s15, 1
    %p96 = por %p94, %p95
    %p97 = scmp.ne.s32.totalorder %s88, %s89
    %p98 = scmp.eq.s32.totalorder %s15, 0
    %p99 = por %p97, %p98
    %p100 = scmp.ne.s32.totalorder %s88, %s89
    %p101 = scmp.eq.s32.totalorder %s16, 1
    %p102 = por %p100, %p101
    %p104 = scmp.ne.s32.totalorder %s89, %s103
    %p105 = scmp.eq.s32.totalorder %s16, 0
    %p106 = por %p104, %p105
    %s107 = ssub.s32 %s10, %s17
    %p108 = scmp.eq.s32.totalorder %s107, 0
    %s110 = sadd.s32 %s109, 1
    %s111 = scalar_select %p108, %s109, %s110
    %p114 = pneg %p108
    %p115 = scmp.eq.s32.totalorder %s10, 1
    %p116 = por %p114, %p115
    %p117 = scmp.ne.s32.totalorder %s109, %s112
    %p118 = scmp.eq.s32.totalorder %s10, 0
    %p119 = por %p117, %p118
    %p120 = scmp.ne.s32.totalorder %s109, %s112
    %p121 = scmp.eq.s32.totalorder %s15, 1
    %p122 = por %p120, %p121
    %p123 = scmp.ne.s32.totalorder %s112, %s113
    %p124 = scmp.eq.s32.totalorder %s15, 0
    %p125 = por %p123, %p124
    %p126 = scmp.ne.s32.totalorder %s112, %s113
    %p127 = scmp.eq.s32.totalorder %s16, 1
    %p128 = por %p126, %p127
    %p130 = scmp.ne.s32.totalorder %s113, %s129
    %p131 = scmp.eq.s32.totalorder %s16, 0
    %p132 = por %p130, %p131
    %p133 = scmp.le.s32.totalorder 1, %s10
    %p134 = scmp.lt.s32.totalorder %s10, 3
    %p135 = pnand %p133, %p134
    %p136 = pneg %p135
    // Predicated region
    $region9: #{pallas_matmul.1} parent=5 // pred_check
      _
    $region10: #{pallas_matmul.1} parent=5 // pred_check_branch
      %138 = sbr.rel (%p135) target = $region12
    $region11: #{pallas_matmul.1} parent=5 // pred_region
      %s139 = ssub.s32 %s10, 1
      // Predicated region
      $region13: #{pallas_matmul.1} parent=11 // pred_check
        %p140 = pneg %p57
      $region14: #{pallas_matmul.1} parent=11 // pred_check_branch
        %142 = sbr.rel (%p140) target = $region16
      $region15: #{pallas_matmul.1} parent=11 // pred_region
        _
      $region16: #{pallas_matmul.1} parent=11 // pred_fallthru
        _
      // Predicated region
      $region17: #{pallas_matmul.1} parent=11 // pred_check
        %p143 = pneg %p78
      $region18: #{pallas_matmul.1} parent=11 // pred_check_branch
        %145 = sbr.rel (%p143) target = $region20
      $region19: #{pallas_matmul.1} parent=11 // pred_region
        _
      $region20: #{pallas_matmul.1} parent=11 // pred_fallthru
        _
      // Predicated region
      $region21: #{pallas_matmul.1} parent=11 // pred_check
        %p146 = pneg %p99
      $region22: #{pallas_matmul.1} parent=11 // pred_check_branch
        %148 = sbr.rel (%p146) target = $region24
      $region23: #{pallas_matmul.1} parent=11 // pred_region
        _
      $region24: #{pallas_matmul.1} parent=11 // pred_fallthru
        _
    $region12: #{pallas_matmul.1} parent=5 // pred_fallthru
      _
    %p149 = scmp.lt.s32.totalorder %s10, 2
    // Predicated region
    $region25: #{pallas_matmul.1} parent=5 // pred_check
      %p150 = pneg %p149
    $region26: #{pallas_matmul.1} parent=5 // pred_check_branch
      %152 = sbr.rel (%p150) target = $region28
    $region27: #{pallas_matmul.1} parent=5 // pred_region
      // Predicated region
      $region29: #{pallas_matmul.1} parent=27 // pred_check
        %p153 = pneg %p30
      $region30: #{pallas_matmul.1} parent=27 // pred_check_branch
        %155 = sbr.rel (%p153) target = $region32
      $region31: #{pallas_matmul.1} parent=27 // pred_region
        %s156 = smul.u32 32, %s10
        %p157 = scmp.lt.s32.totalorder %s156, 63
        %s158 = scalar_select %p157, %s156, 63
        %s159 = smul.addr %s158, 4
        %s160 = scalar_lea.vmem %s0, %s159
        %s161 = smul.u32 32, %s10
      $region32: #{pallas_matmul.1} parent=27 // pred_fallthru
        _
    $region28: #{pallas_matmul.1} parent=5 // pred_fallthru
      _
    %p162 = scmp.le.s32.totalorder 1, %s10
    %p163 = scmp.lt.s32.totalorder %s10, 3
    %p164 = pnand %p162, %p163
    %p165 = pneg %p164
    // Predicated region
    $region33: #{pallas_matmul.1} parent=5 // pred_check
      _
    $region34: #{pallas_matmul.1} parent=5 // pred_check_branch
      %167 = sbr.rel (%p164) target = $region36
    $region35: #{pallas_matmul.1} parent=5 // pred_region
      %s168 = ssub.s32 %s10, 1
      %s169 = smul.u32 32, %s15
      %p170 = scmp.lt.s32.totalorder %s169, 63
      %s171 = scalar_select %p170, %s169, 63
      %s172 = smul.addr %s171, 4
      %s173 = scalar_lea.vmem %s0, %s172
      %p174 = pneg %p36
      %p175 = pneg %p33
      %p176 = pneg %p57
      %p177 = pneg %p54
      %p178 = pneg %p78
      %p179 = pneg %p75
      %p180 = pneg %p99
      %p181 = pneg %p96
      %p182 = pneg %p125
      %p183 = pneg %p122
      %s184 = smul.u32 32, %s15
      %p185 = scmp.lt.s32.totalorder %s184, 63
      %s186 = scalar_select %p185, %s184, 63
      %s187 = smul.addr %s186, 4
      %s188 = scalar_lea.vmem %s4, %s187
      %s189 = smul.u32 32, %s15
      %p190 = scmp.lt.s32.totalorder %s189, 63
      %s191 = scalar_select %p190, %s189, 63
      %s192 = smul.addr %s191, 4
      %s193 = scalar_lea.vmem %s0, %s192
      %s194 = smul.u32 32, %s15
      %s195 = smul.u32 32, %s15
      %p196 = scmp.lt.s32.totalorder %s195, 63
      %s197 = scalar_select %p196, %s195, 63
      %s198 = smul.addr %s197, 4
      %s199 = scalar_lea.vmem %s4, %s198
      %s200 = smul.u32 32, %s15
      %v202 = vld [vmem:[%s193] sm:$0xf]
      %v203 = vld [vmem:[%s193 + $0x4] sm:$0xf]
      %v204 = vld [vmem:[%s193 + $0x8] sm:$0xf]
      %v205 = vld [vmem:[%s193 + $0xc] sm:$0xf]
      %v206 = vld [vmem:[%s193 + $0x10] sm:$0xf]
      %v207 = vld [vmem:[%s193 + $0x14] sm:$0xf]
      %v208 = vld [vmem:[%s193 + $0x18] sm:$0xf]
      %v209 = vld [vmem:[%s193 + $0x1c] sm:$0xf]
      %v210 = vld [vmem:[%s193 + $0x20] sm:$0xf]
      %v211 = vld [vmem:[%s193 + $0x24] sm:$0xf]
      %v212 = vld [vmem:[%s193 + $0x28] sm:$0xf]
      %v213 = vld [vmem:[%s193 + $0x2c] sm:$0xf]
      %v214 = vld [vmem:[%s193 + $0x30] sm:$0xf]
      %v215 = vld [vmem:[%s193 + $0x34] sm:$0xf]
      %v216 = vld [vmem:[%s193 + $0x38] sm:$0xf]
      %v217 = vld [vmem:[%s193 + $0x3c] sm:$0xf]
      %v218 = vld [vmem:[%s193 + $0x40] sm:$0xf]
      %v219 = vld [vmem:[%s193 + $0x44] sm:$0xf]
      %v220 = vld [vmem:[%s193 + $0x48] sm:$0xf]
      %v221 = vld [vmem:[%s193 + $0x4c] sm:$0xf]
      %v222 = vld [vmem:[%s193 + $0x50] sm:$0xf]
      %v223 = vld [vmem:[%s193 + $0x54] sm:$0xf]
      %v224 = vld [vmem:[%s193 + $0x58] sm:$0xf]
      %v225 = vld [vmem:[%s193 + $0x5c] sm:$0xf]
      %v226 = vld [vmem:[%s193 + $0x60] sm:$0xf]
      %v227 = vld [vmem:[%s193 + $0x64] sm:$0xf]
      %v228 = vld [vmem:[%s193 + $0x68] sm:$0xf]
      %v229 = vld [vmem:[%s193 + $0x6c] sm:$0xf]
      %v230 = vld [vmem:[%s193 + $0x70] sm:$0xf]
      %v231 = vld [vmem:[%s193 + $0x74] sm:$0xf]
      %v232 = vld [vmem:[%s193 + $0x78] sm:$0xf]
      %v233 = vld [vmem:[%s193 + $0x7c] sm:$0xf]
      %v234 = vld [vmem:[%s1] sm:$0xf]
      %v235 = vld [vmem:[%s1 + $0x4] sm:$0xf]
      %v236 = vld [vmem:[%s1 + $0x8] sm:$0xf]
      %v237 = vld [vmem:[%s1 + $0xc] sm:$0xf]
      %v238 = vld [vmem:[%s1 + $0x10] sm:$0xf]
      %v239 = vld [vmem:[%s1 + $0x14] sm:$0xf]
      %v240 = vld [vmem:[%s1 + $0x18] sm:$0xf]
      %v241 = vld [vmem:[%s1 + $0x1c] sm:$0xf]
      %v242 = vld [vmem:[%s1 + $0x20] sm:$0xf]
      %v243 = vld [vmem:[%s1 + $0x24] sm:$0xf]
      %v244 = vld [vmem:[%s1 + $0x28] sm:$0xf]
      %v245 = vld [vmem:[%s1 + $0x2c] sm:$0xf]
      %v246 = vld [vmem:[%s1 + $0x30] sm:$0xf]
      %v247 = vld [vmem:[%s1 + $0x34] sm:$0xf]
      %v248 = vld [vmem:[%s1 + $0x38] sm:$0xf]
      %v249 = vld [vmem:[%s1 + $0x3c] sm:$0xf]
      %v250 = vld [vmem:[%s2] sm:$0x1]
      %v252 = vlaneseq
      %v253 = vshrl.u32 %v252, 7
      %v254 = vsub.s32 0, %v253
      %v255 = vrot.slane %v250, %v254
      %v289 = vunpack.c.l.b16 %v202
      %v290 = vunpack.c.l.b16 %v203
      %v291 = vunpack.c.l.b16 %v204
      %v292 = vunpack.c.l.b16 %v205
      %v293 = vunpack.c.l.b16 %v206
      %v294 = vunpack.c.l.b16 %v207
      %v295 = vunpack.c.l.b16 %v208
      %v296 = vunpack.c.l.b16 %v209
      %v297 = vunpack.c.l.b16 %v210
      %v298 = vunpack.c.l.b16 %v211
      %v299 = vunpack.c.l.b16 %v212
      %v300 = vunpack.c.l.b16 %v213
      %v301 = vunpack.c.l.b16 %v214
      %v302 = vunpack.c.l.b16 %v215
      %v303 = vunpack.c.l.b16 %v216
      %v304 = vunpack.c.l.b16 %v217
      %v305 = vunpack.c.l.b16 %v218
      %v306 = vunpack.c.l.b16 %v219
      %v307 = vunpack.c.l.b16 %v220
      %v308 = vunpack.c.l.b16 %v221
      %v309 = vunpack.c.l.b16 %v222
      %v310 = vunpack.c.l.b16 %v223
      %v311 = vunpack.c.l.b16 %v224
      %v312 = vunpack.c.l.b16 %v225
      %v313 = vunpack.c.l.b16 %v226
      %v314 = vunpack.c.l.b16 %v227
      %v315 = vunpack.c.l.b16 %v228
      %v316 = vunpack.c.l.b16 %v229
      %v317 = vunpack.c.l.b16 %v230
      %v318 = vunpack.c.l.b16 %v231
      %v319 = vunpack.c.l.b16 %v232
      %v320 = vunpack.c.l.b16 %v233
      %v321 = vpack.c.b16 %v290, %v289
      %v322 = vpack.c.b16 %v292, %v291
      %v323 = vpack.c.b16 %v294, %v293
      %v324 = vpack.c.b16 %v296, %v295
      %v325 = vpack.c.b16 %v298, %v297
      %v326 = vpack.c.b16 %v300, %v299
      %v327 = vpack.c.b16 %v302, %v301
      %v328 = vpack.c.b16 %v304, %v303
      %v329 = vpack.c.b16 %v306, %v305
      %v330 = vpack.c.b16 %v308, %v307
      %v331 = vpack.c.b16 %v310, %v309
      %v332 = vpack.c.b16 %v312, %v311
      %v333 = vpack.c.b16 %v314, %v313
      %v334 = vpack.c.b16 %v316, %v315
      %v335 = vpack.c.b16 %v318, %v317
      %v336 = vpack.c.b16 %v320, %v319
      %v369 = vunpack.c.l.b16 %v234
      %v370 = vunpack.c.l.b16 %v235
      %v371 = vunpack.c.l.b16 %v236
      %v372 = vunpack.c.l.b16 %v237
      %v373 = vunpack.c.l.b16 %v238
      %v374 = vunpack.c.l.b16 %v239
      %v375 = vunpack.c.l.b16 %v240
      %v376 = vunpack.c.l.b16 %v241
      %v377 = vunpack.c.l.b16 %v242
      %v378 = vunpack.c.l.b16 %v243
      %v379 = vunpack.c.l.b16 %v244
      %v380 = vunpack.c.l.b16 %v245
      %v381 = vunpack.c.l.b16 %v246
      %v382 = vunpack.c.l.b16 %v247
      %v383 = vunpack.c.l.b16 %v248
      %v384 = vunpack.c.l.b16 %v249
      %v385 = vpack.c.b16 %v370, %v369
      %v386 = vpack.c.b16 %v372, %v371
      %v387 = vpack.c.b16 %v374, %v373
      %v388 = vpack.c.b16 %v376, %v375
      %v389 = vpack.c.b16 %v378, %v377
      %v390 = vpack.c.b16 %v380, %v379
      %v391 = vpack.c.b16 %v382, %v381
      %v392 = vpack.c.b16 %v384, %v383
      %401 = vmatprep.subr.bf16.mxu0 0
      %402 = vmatpush1.bf16.msra.mxu0 %v385
      %403 = vmatprep.subr.bf16.mxu0 0
      %404 = vmatpush1.bf16.msra.mxu0 %v386
      %405 = vmatprep.subr.bf16.mxu0 0
      %406 = vmatpush1.bf16.msra.mxu0 %v387
      %407 = vmatprep.subr.bf16.mxu0 0
      %408 = vmatpush1.bf16.msra.mxu0 %v388
      %409 = vmatprep.subr.bf16.mxu0 0
      %410 = vmatpush1.bf16.msra.mxu0 %v389
      %411 = vmatprep.subr.bf16.mxu0 0
      %412 = vmatpush1.bf16.msra.mxu0 %v390
      %413 = vmatprep.subr.bf16.mxu0 0
      %414 = vmatpush1.bf16.msra.mxu0 %v391
      %415 = vmatprep.subr.bf16.mxu0 0
      %416 = vmatpush1.bf16.msra.mxu0 %v392
      %417 = vmatprep.subr.bf16.mxu0 0
      %418 = vmatpush1.bf16.msra.mxu0 0
      %419 = vmatprep.subr.bf16.mxu0 0
      %420 = vmatpush1.bf16.msra.mxu0 0
      %421 = vmatprep.subr.bf16.mxu0 0
      %422 = vmatpush1.bf16.msra.mxu0 0
      %423 = vmatprep.subr.bf16.mxu0 0
      %424 = vmatpush1.bf16.msra.mxu0 0
      %425 = vmatprep.subr.bf16.mxu0 0
      %426 = vmatpush1.bf16.msra.mxu0 0
      %427 = vmatprep.subr.bf16.mxu0 0
      %428 = vmatpush1.bf16.msra.mxu0 0
      %429 = vmatprep.subr.bf16.mxu0 0
      %430 = vmatpush1.bf16.msra.mxu0 0
      %431 = vmatprep.subr.bf16.mxu0 0
      %432 = vmatpush1.bf16.msra.mxu0 0
      %433 = vmatprep.mubr.bf16.mxu0 0
      %434 = vmatmul.mubr.bf16.gmra.mrb[0].mxu0 %v321
      %v435 = vpop.f32.mrb[0].mxu0
      %v436 = vadd.f32 %v255, %v435
      %v437 = vpop.f32.mrb[0].mxu0
      %v438 = vpop.f32.mrb[0].mxu0
      %v439 = vadd.f32 %v255, %v438
      %v440 = vpop.f32.mrb[0].mxu0
      %441 = vmatprep.mubr.bf16.mxu0 0
      %442 = vmatmul.mubr.bf16.gmra.mrb[0].mxu0 %v322
      %v443 = vpop.f32.mrb[0].mxu0
      %v444 = vadd.f32 %v255, %v443
      %v445 = vpop.f32.mrb[0].mxu0
      %v446 = vpop.f32.mrb[0].mxu0
      %v447 = vadd.f32 %v255, %v446
      %v448 = vpop.f32.mrb[0].mxu0
      %449 = vmatprep.mubr.bf16.mxu0 0
      %450 = vmatmul.mubr.bf16.gmra.mrb[0].mxu0 %v323
      %v451 = vpop.f32.mrb[0].mxu0
      %v452 = vadd.f32 %v255, %v451
      %v453 = vpop.f32.mrb[0].mxu0
      %v454 = vpop.f32.mrb[0].mxu0
      %v455 = vadd.f32 %v255, %v454
      %v456 = vpop.f32.mrb[0].mxu0
      %457 = vmatprep.mubr.bf16.mxu0 0
      %458 = vmatmul.mubr.bf16.gmra.mrb[0].mxu0 %v324
      %v459 = vpop.f32.mrb[0].mxu0
      %v460 = vadd.f32 %v255, %v459
      %v461 = vpop.f32.mrb[0].mxu0
      %v462 = vpop.f32.mrb[0].mxu0
      %v463 = vadd.f32 %v255, %v462
      %v464 = vpop.f32.mrb[0].mxu0
      %465 = vmatprep.mubr.bf16.mxu0 0
      %466 = vmatmul.mubr.bf16.gmra.mrb[0].mxu0 %v325
      %v467 = vpop.f32.mrb[0].mxu0
      %v468 = vadd.f32 %v255, %v467
      %v469 = vpop.f32.mrb[0].mxu0
      %v470 = vpop.f32.mrb[0].mxu0
      %v471 = vadd.f32 %v255, %v470
      %v472 = vpop.f32.mrb[0].mxu0
      %473 = vmatprep.mubr.bf16.mxu0 0
      %474 = vmatmul.mubr.bf16.gmra.mrb[0].mxu0 %v326
      %v475 = vpop.f32.mrb[0].mxu0
      %v476 = vadd.f32 %v255, %v475
      %v477 = vpop.f32.mrb[0].mxu0
      %v478 = vpop.f32.mrb[0].mxu0
      %v479 = vadd.f32 %v255, %v478
      %v480 = vpop.f32.mrb[0].mxu0
      %481 = vmatprep.mubr.bf16.mxu0 0
      %482 = vmatmul.mubr.bf16.gmra.mrb[0].mxu0 %v327
      %v483 = vpop.f32.mrb[0].mxu0
      %v484 = vadd.f32 %v255, %v483
      %v485 = vpop.f32.mrb[0].mxu0
      %v486 = vpop.f32.mrb[0].mxu0
      %v487 = vadd.f32 %v255, %v486
      %v488 = vpop.f32.mrb[0].mxu0
      %489 = vmatprep.mubr.bf16.mxu0 0
      %490 = vmatmul.mubr.bf16.gmra.mrb[0].mxu0 %v328
      %v491 = vpop.f32.mrb[0].mxu0
      %v492 = vadd.f32 %v255, %v491
      %v493 = vpop.f32.mrb[0].mxu0
      %v494 = vpop.f32.mrb[0].mxu0
      %v495 = vadd.f32 %v255, %v494
      %v496 = vpop.f32.mrb[0].mxu0
      %497 = vmatprep.mubr.bf16.mxu0 0
      %498 = vmatmul.mubr.bf16.gmra.mrb[0].mxu0 %v329
      %v499 = vpop.f32.mrb[0].mxu0
      %v500 = vadd.f32 %v255, %v499
      %v501 = vpop.f32.mrb[0].mxu0
      %v502 = vpop.f32.mrb[0].mxu0
      %v503 = vadd.f32 %v255, %v502
      %v504 = vpop.f32.mrb[0].mxu0
      %505 = vmatprep.mubr.bf16.mxu0 0
      %506 = vmatmul.mubr.bf16.gmra.mrb[0].mxu0 %v330
      %v507 = vpop.f32.mrb[0].mxu0
      %v508 = vadd.f32 %v255, %v507
      %v509 = vpop.f32.mrb[0].mxu0
      %v510 = vpop.f32.mrb[0].mxu0
      %v511 = vadd.f32 %v255, %v510
      %v512 = vpop.f32.mrb[0].mxu0
      %513 = vmatprep.mubr.bf16.mxu0 0
      %514 = vmatmul.mubr.bf16.gmra.mrb[0].mxu0 %v331
      %v515 = vpop.f32.mrb[0].mxu0
      %v516 = vadd.f32 %v255, %v515
      %v517 = vpop.f32.mrb[0].mxu0
      %v518 = vpop.f32.mrb[0].mxu0
      %v519 = vadd.f32 %v255, %v518
      %v520 = vpop.f32.mrb[0].mxu0
      %521 = vmatprep.mubr.bf16.mxu0 0
      %522 = vmatmul.mubr.bf16.gmra.mrb[0].mxu0 %v332
      %v523 = vpop.f32.mrb[0].mxu0
      %v524 = vadd.f32 %v255, %v523
      %v525 = vpop.f32.mrb[0].mxu0
      %v526 = vpop.f32.mrb[0].mxu0
      %v527 = vadd.f32 %v255, %v526
      %v528 = vpop.f32.mrb[0].mxu0
      %529 = vmatprep.mubr.bf16.mxu0 0
      %530 = vmatmul.mubr.bf16.gmra.mrb[0].mxu0 %v333
      %v531 = vpop.f32.mrb[0].mxu0
      %v532 = vadd.f32 %v255, %v531
      %v533 = vpop.f32.mrb[0].mxu0
      %v534 = vpop.f32.mrb[0].mxu0
      %v535 = vadd.f32 %v255, %v534
      %v536 = vpop.f32.mrb[0].mxu0
      %537 = vmatprep.mubr.bf16.mxu0 0
      %538 = vmatmul.mubr.bf16.gmra.mrb[0].mxu0 %v334
      %v539 = vpop.f32.mrb[0].mxu0
      %v540 = vadd.f32 %v255, %v539
      %v541 = vpop.f32.mrb[0].mxu0
      %v542 = vpop.f32.mrb[0].mxu0
      %v543 = vadd.f32 %v255, %v542
      %v544 = vpop.f32.mrb[0].mxu0
      %545 = vmatprep.mubr.bf16.mxu0 0
      %546 = vmatmul.mubr.bf16.gmra.mrb[0].mxu0 %v335
      %v547 = vpop.f32.mrb[0].mxu0
      %v548 = vadd.f32 %v255, %v547
      %v549 = vpop.f32.mrb[0].mxu0
      %v550 = vpop.f32.mrb[0].mxu0
      %v551 = vadd.f32 %v255, %v550
      %v552 = vpop.f32.mrb[0].mxu0
      %553 = vmatprep.mubr.bf16.mxu0 0
      %554 = vmatmul.mubr.bf16.gmra.mrb[0].mxu0 %v336
      %v555 = vpop.f32.mrb[0].mxu0
      %v556 = vadd.f32 %v255, %v555
      %v557 = vpop.f32.mrb[0].mxu0
      %v558 = vpop.f32.mrb[0].mxu0
      %v559 = vadd.f32 %v255, %v558
      %v560 = vpop.f32.mrb[0].mxu0
      %561 = vdwg.mxu0
      %vm562 = vcmp.ge.f32.partialorder %v436, 0.0
      %vm563 = vcmp.ge.f32.partialorder %v439, 0.0
      %vm564 = vcmp.ge.f32.partialorder %v444, 0.0
      %vm565 = vcmp.ge.f32.partialorder %v447, 0.0
      %vm566 = vcmp.ge.f32.partialorder %v452, 0.0
      %vm567 = vcmp.ge.f32.partialorder %v455, 0.0
      %vm568 = vcmp.ge.f32.partialorder %v460, 0.0
      %vm569 = vcmp.ge.f32.partialorder %v463, 0.0
      %vm570 = vcmp.ge.f32.partialorder %v468, 0.0
      %vm571 = vcmp.ge.f32.partialorder %v471, 0.0
      %vm572 = vcmp.ge.f32.partialorder %v476, 0.0
      %vm573 = vcmp.ge.f32.partialorder %v479, 0.0
      %vm574 = vcmp.ge.f32.partialorder %v484, 0.0
      %vm575 = vcmp.ge.f32.partialorder %v487, 0.0
      %vm576 = vcmp.ge.f32.partialorder %v492, 0.0
      %vm577 = vcmp.ge.f32.partialorder %v495, 0.0
      %vm578 = vcmp.ge.f32.partialorder %v500, 0.0
      %vm579 = vcmp.ge.f32.partialorder %v503, 0.0
      %vm580 = vcmp.ge.f32.partialorder %v508, 0.0
      %vm581 = vcmp.ge.f32.partialorder %v511, 0.0
      %vm582 = vcmp.ge.f32.partialorder %v516, 0.0
      %vm583 = vcmp.ge.f32.partialorder %v519, 0.0
      %vm584 = vcmp.ge.f32.partialorder %v524, 0.0
      %vm585 = vcmp.ge.f32.partialorder %v527, 0.0
      %vm586 = vcmp.ge.f32.partialorder %v532, 0.0
      %vm587 = vcmp.ge.f32.partialorder %v535, 0.0
      %vm588 = vcmp.ge.f32.partialorder %v540, 0.0
      %vm589 = vcmp.ge.f32.partialorder %v543, 0.0
      %vm590 = vcmp.ge.f32.partialorder %v548, 0.0
      %vm591 = vcmp.ge.f32.partialorder %v551, 0.0
      %vm592 = vcmp.ge.f32.partialorder %v556, 0.0
      %vm593 = vcmp.ge.f32.partialorder %v559, 0.0
      %v594 = vld [vmem:[%s3] sm:$0x1]
      %v596 = vlaneseq
      %v597 = vshrl.u32 %v596, 7
      %v598 = vsub.s32 0, %v597
      %v599 = vrot.slane %v594, %v598
      %v601 = vmul.f32 %v436, %v599
      %v602 = vmul.f32 %v439, %v599
      %v603 = vmul.f32 %v444, %v599
      %v604 = vmul.f32 %v447, %v599
      %v605 = vmul.f32 %v452, %v599
      %v606 = vmul.f32 %v455, %v599
      %v607 = vmul.f32 %v460, %v599
      %v608 = vmul.f32 %v463, %v599
      %v609 = vmul.f32 %v468, %v599
      %v610 = vmul.f32 %v471, %v599
      %v611 = vmul.f32 %v476, %v599
      %v612 = vmul.f32 %v479, %v599
      %v613 = vmul.f32 %v484, %v599
      %v614 = vmul.f32 %v487, %v599
      %v615 = vmul.f32 %v492, %v599
      %v616 = vmul.f32 %v495, %v599
      %v617 = vmul.f32 %v500, %v599
      %v618 = vmul.f32 %v503, %v599
      %v619 = vmul.f32 %v508, %v599
      %v620 = vmul.f32 %v511, %v599
      %v621 = vmul.f32 %v516, %v599
      %v622 = vmul.f32 %v519, %v599
      %v623 = vmul.f32 %v524, %v599
      %v624 = vmul.f32 %v527, %v599
      %v625 = vmul.f32 %v532, %v599
      %v626 = vmul.f32 %v535, %v599
      %v627 = vmul.f32 %v540, %v599
      %v628 = vmul.f32 %v543, %v599
      %v629 = vmul.f32 %v548, %v599
      %v630 = vmul.f32 %v551, %v599
      %v631 = vmul.f32 %v556, %v599
      %v632 = vmul.f32 %v559, %v599
      %v633 = vsel %vm562, %v436, %v601
      %v634 = vsel %vm563, %v439, %v602
      %v635 = vsel %vm564, %v444, %v603
      %v636 = vsel %vm565, %v447, %v604
      %v637 = vsel %vm566, %v452, %v605
      %v638 = vsel %vm567, %v455, %v606
      %v639 = vsel %vm568, %v460, %v607
      %v640 = vsel %vm569, %v463, %v608
      %v641 = vsel %vm570, %v468, %v609
      %v642 = vsel %vm571, %v471, %v610
      %v643 = vsel %vm572, %v476, %v611
      %v644 = vsel %vm573, %v479, %v612
      %v645 = vsel %vm574, %v484, %v613
      %v646 = vsel %vm575, %v487, %v614
      %v647 = vsel %vm576, %v492, %v615
      %v648 = vsel %vm577, %v495, %v616
      %v649 = vsel %vm578, %v500, %v617
      %v650 = vsel %vm579, %v503, %v618
      %v651 = vsel %vm580, %v508, %v619
      %v652 = vsel %vm581, %v511, %v620
      %v653 = vsel %vm582, %v516, %v621
      %v654 = vsel %vm583, %v519, %v622
      %v655 = vsel %vm584, %v524, %v623
      %v656 = vsel %vm585, %v527, %v624
      %v657 = vsel %vm586, %v532, %v625
      %v658 = vsel %vm587, %v535, %v626
      %v659 = vsel %vm588, %v540, %v627
      %v660 = vsel %vm589, %v543, %v628
      %v661 = vsel %vm590, %v548, %v629
      %v662 = vsel %vm591, %v551, %v630
      %v663 = vsel %vm592, %v556, %v631
      %v664 = vsel %vm593, %v559, %v632
      %v665 = vpack.c.bf16 %v634, %v633
      %v666 = vpack.c.bf16 %v636, %v635
      %v667 = vpack.c.bf16 %v638, %v637
      %v668 = vpack.c.bf16 %v640, %v639
      %v669 = vpack.c.bf16 %v642, %v641
      %v670 = vpack.c.bf16 %v644, %v643
      %v671 = vpack.c.bf16 %v646, %v645
      %v672 = vpack.c.bf16 %v648, %v647
      %v673 = vpack.c.bf16 %v650, %v649
      %v674 = vpack.c.bf16 %v652, %v651
      %v675 = vpack.c.bf16 %v654, %v653
      %v676 = vpack.c.bf16 %v656, %v655
      %v677 = vpack.c.bf16 %v658, %v657
      %v678 = vpack.c.bf16 %v660, %v659
      %v679 = vpack.c.bf16 %v662, %v661
      %v680 = vpack.c.bf16 %v664, %v663
      %v697 = vunpack.c.l.b16 %v665
      %v698 = vunpack.c.h.b16 %v665
      %v699 = vunpack.c.l.b16 %v666
      %v700 = vunpack.c.h.b16 %v666
      %v701 = vunpack.c.l.b16 %v667
      %v702 = vunpack.c.h.b16 %v667
      %v703 = vunpack.c.l.b16 %v668
      %v704 = vunpack.c.h.b16 %v668
      %v705 = vunpack.c.l.b16 %v669
      %v706 = vunpack.c.h.b16 %v669
      %v707 = vunpack.c.l.b16 %v670
      %v708 = vunpack.c.h.b16 %v670
      %v709 = vunpack.c.l.b16 %v671
      %v710 = vunpack.c.h.b16 %v671
      %v711 = vunpack.c.l.b16 %v672
      %v712 = vunpack.c.h.b16 %v672
      %v713 = vunpack.c.l.b16 %v673
      %v714 = vunpack.c.h.b16 %v673
      %v715 = vunpack.c.l.b16 %v674
      %v716 = vunpack.c.h.b16 %v674
      %v717 = vunpack.c.l.b16 %v675
      %v718 = vunpack.c.h.b16 %v675
      %v719 = vunpack.c.l.b16 %v676
      %v720 = vunpack.c.h.b16 %v676
      %v721 = vunpack.c.l.b16 %v677
      %v722 = vunpack.c.h.b16 %v677
      %v723 = vunpack.c.l.b16 %v678
      %v724 = vunpack.c.h.b16 %v678
      %v725 = vunpack.c.l.b16 %v679
      %v726 = vunpack.c.h.b16 %v679
      %v727 = vunpack.c.l.b16 %v680
      %v728 = vunpack.c.h.b16 %v680
      %v729 = vpack.c.b16 %v697, %v697
      %v730 = vpack.c.b16 %v698, %v698
      %v731 = vpack.c.b16 %v699, %v699
      %v732 = vpack.c.b16 %v700, %v700
      %v733 = vpack.c.b16 %v701, %v701
      %v734 = vpack.c.b16 %v702, %v702
      %v735 = vpack.c.b16 %v703, %v703
      %v736 = vpack.c.b16 %v704, %v704
      %v737 = vpack.c.b16 %v705, %v705
      %v738 = vpack.c.b16 %v706, %v706
      %v739 = vpack.c.b16 %v707, %v707
      %v740 = vpack.c.b16 %v708, %v708
      %v741 = vpack.c.b16 %v709, %v709
      %v742 = vpack.c.b16 %v710, %v710
      %v743 = vpack.c.b16 %v711, %v711
      %v744 = vpack.c.b16 %v712, %v712
      %v745 = vpack.c.b16 %v713, %v713
      %v746 = vpack.c.b16 %v714, %v714
      %v747 = vpack.c.b16 %v715, %v715
      %v748 = vpack.c.b16 %v716, %v716
      %v749 = vpack.c.b16 %v717, %v717
      %v750 = vpack.c.b16 %v718, %v718
      %v751 = vpack.c.b16 %v719, %v719
      %v752 = vpack.c.b16 %v720, %v720
      %v753 = vpack.c.b16 %v721, %v721
      %v754 = vpack.c.b16 %v722, %v722
      %v755 = vpack.c.b16 %v723, %v723
      %v756 = vpack.c.b16 %v724, %v724
      %v757 = vpack.c.b16 %v725, %v725
      %v758 = vpack.c.b16 %v726, %v726
      %v759 = vpack.c.b16 %v727, %v727
      %v760 = vpack.c.b16 %v728, %v728
      %vm793 = vcmask 388096
      %794 = vst.msk [vmem:[%s199] sm:$0xf] %vm793, %v729
      %795 = vst.msk [vmem:[%s199 + $0x4] sm:$0xf] %vm793, %v730
      %796 = vst.msk [vmem:[%s199 + $0x8] sm:$0xf] %vm793, %v731
      %797 = vst.msk [vmem:[%s199 + $0xc] sm:$0xf] %vm793, %v732
      %798 = vst.msk [vmem:[%s199 + $0x10] sm:$0xf] %vm793, %v733
      %799 = vst.msk [vmem:[%s199 + $0x14] sm:$0xf] %vm793, %v734
      %800 = vst.msk [vmem:[%s199 + $0x18] sm:$0xf] %vm793, %v735
      %801 = vst.msk [vmem:[%s199 + $0x1c] sm:$0xf] %vm793, %v736
      %802 = vst.msk [vmem:[%s199 + $0x20] sm:$0xf] %vm793, %v737
      %803 = vst.msk [vmem:[%s199 + $0x24] sm:$0xf] %vm793, %v738
      %804 = vst.msk [vmem:[%s199 + $0x28] sm:$0xf] %vm793, %v739
      %805 = vst.msk [vmem:[%s199 + $0x2c] sm:$0xf] %vm793, %v740
      %806 = vst.msk [vmem:[%s199 + $0x30] sm:$0xf] %vm793, %v741
      %807 = vst.msk [vmem:[%s199 + $0x34] sm:$0xf] %vm793, %v742
      %808 = vst.msk [vmem:[%s199 + $0x38] sm:$0xf] %vm793, %v743
      %809 = vst.msk [vmem:[%s199 + $0x3c] sm:$0xf] %vm793, %v744
      %810 = vst.msk [vmem:[%s199 + $0x40] sm:$0xf] %vm793, %v745
      %811 = vst.msk [vmem:[%s199 + $0x44] sm:$0xf] %vm793, %v746
      %812 = vst.msk [vmem:[%s199 + $0x48] sm:$0xf] %vm793, %v747
      %813 = vst.msk [vmem:[%s199 + $0x4c] sm:$0xf] %vm793, %v748
      %814 = vst.msk [vmem:[%s199 + $0x50] sm:$0xf] %vm793, %v749
      %815 = vst.msk [vmem:[%s199 + $0x54] sm:$0xf] %vm793, %v750
      %816 = vst.msk [vmem:[%s199 + $0x58] sm:$0xf] %vm793, %v751
      %817 = vst.msk [vmem:[%s199 + $0x5c] sm:$0xf] %vm793, %v752
      %818 = vst.msk [vmem:[%s199 + $0x60] sm:$0xf] %vm793, %v753
      %819 = vst.msk [vmem:[%s199 + $0x64] sm:$0xf] %vm793, %v754
      %820 = vst.msk [vmem:[%s199 + $0x68] sm:$0xf] %vm793, %v755
      %821 = vst.msk [vmem:[%s199 + $0x6c] sm:$0xf] %vm793, %v756
      %822 = vst.msk [vmem:[%s199 + $0x70] sm:$0xf] %vm793, %v757
      %823 = vst.msk [vmem:[%s199 + $0x74] sm:$0xf] %vm793, %v758
      %824 = vst.msk [vmem:[%s199 + $0x78] sm:$0xf] %vm793, %v759
      %825 = vst.msk [vmem:[%s199 + $0x7c] sm:$0xf] %vm793, %v760
      %s826 = smul.u32 32, %s15
      %p827 = scmp.lt.s32.totalorder %s826, 63
      %s828 = scalar_select %p827, %s826, 63
      %s829 = smul.addr %s828, 4
      %s830 = scalar_lea.vmem %s4, %s829
      // Predicated region
      $region37: #{pallas_matmul.1} parent=35 // pred_check
        %p831 = pneg %p122
      $region38: #{pallas_matmul.1} parent=35 // pred_check_branch
        %833 = sbr.rel (%p831) target = $region40
      $region39: #{pallas_matmul.1} parent=35 // pred_region
        %s834 = smul.u32 32, %s15
      $region40: #{pallas_matmul.1} parent=35 // pred_fallthru
        _
    $region36: #{pallas_matmul.1} parent=5 // pred_fallthru
      _
    %p835 = scmp.le.s32.totalorder 2, %s10
    // Predicated region
    $region41: #{pallas_matmul.1} parent=5 // pred_check
      %p836 = pneg %p835
    $region42: #{pallas_matmul.1} parent=5 // pred_check_branch
      %838 = sbr.rel (%p836) target = $region44
    $region43: #{pallas_matmul.1} parent=5 // pred_region
      %s839 = ssub.s32 %s10, 2
      // Predicated region
      $region45: #{pallas_matmul.1} parent=43 // pred_check
        %p840 = pneg %p128
      $region46: #{pallas_matmul.1} parent=43 // pred_check_branch
        %842 = sbr.rel (%p840) target = $region48
      $region47: #{pallas_matmul.1} parent=43 // pred_region
        %s843 = smul.u32 32, %s16
        %p844 = scmp.lt.s32.totalorder %s843, 63
        %s845 = scalar_select %p844, %s843, 63
        %s846 = smul.addr %s845, 4
        %s847 = scalar_lea.vmem %s4, %s846
      $region48: #{pallas_matmul.1} parent=43 // pred_fallthru
        _
    $region44: #{pallas_matmul.1} parent=5 // pred_fallthru
      _
  $region6: #{pallas_matmul.1} parent=0 // loop_footer
    %s14 = sadd.s32 1, %s10
  $region7: #{pallas_matmul.1} parent=0 // loop_footer_branch
    %9 = sbr.rel target = $region3
  $region8: #{pallas_matmul.1} parent=0 // loop_exit
    _

</llo_original>
